<compile_context>
chip_gen: v5e
topology: v5e:2x2
jax: 0.10.0
libtpu: 0.0.40
codegen_flags: <defaults>
</compile_context>

<pallas_src>
import functools

import jax
import jax.numpy as jnp
from jax.experimental import pallas as pl
from jax.experimental.pallas import tpu as pltpu


def _round_up(x, m):
    return ((x + m - 1) // m) * m


def _wbce_kernel(x_ref, t_ref, out_ref, acc_ref, *, tb, n_rows):
    c = pl.program_id(0)   # parallel chunk (second TensorCore on v7x)
    i = pl.program_id(1)   # arbitrary (reduction) axis within the chunk

    @pl.when(i == 0)
    def _init():
        acc_ref[...] = jnp.zeros_like(acc_ref)

    x = x_ref[...].astype(jnp.float32)      # (tb, W)
    t = t_ref[...].astype(jnp.float32)      # (tb, W)

    eps = 1e-15
    # Upper clamp to 1 - 1e-15 is a no-op in f32, so a single maximum suffices.
    prob = jnp.maximum(jax.nn.sigmoid(x), eps)
    # Clamp the logs at -100 BEFORE they are combined (matches
    # F.binary_cross_entropy and keeps masked/garbage rows finite-by-select).
    log_p = jnp.maximum(jnp.log(prob), -100.0)
    log_1mp = jnp.maximum(jnp.log(1.0 - prob), -100.0)
    # s == -loss; the negation is folded into the wrapper scale.
    s = t * (log_p - log_1mp) + log_1mp

    # Row-tail mask: zero rows beyond the true row count (covers the partial
    # trailing block and any clamped/duplicated blocks of the parallel split).
    g = c * pl.num_programs(1) + i          # global block index
    row0 = g * tb
    rows = row0 + jax.lax.broadcasted_iota(jnp.int32, s.shape, 0)
    s = jnp.where(rows < n_rows, s, 0.0)

    # Full-vreg accumulator: layout-preserving (tb//8, 8, W) reshape, then pure
    # VPU adds over the leading axis. No per-step cross-sublane reduce.
    acc_ref[...] += s.reshape(tb // 8, 8, s.shape[1]).sum(axis=0)

    @pl.when(i == pl.num_programs(1) - 1)
    def _finalize():
        out_ref[0] = acc_ref[...]


def weighted_bce(inp, target, label_weight, *, tile_bytes=2 * 1024 * 1024):
    """inp, target: [B, L] (f32 or bf16); label_weight: [L] -> scalar f32."""
    B, L = inp.shape
    w32 = label_weight.astype(jnp.float32)

    # --- lane packing: copy-free reshapes only, never jnp.pad ---------------
    if L % 128 == 0:
        spr, W = 1, L                                   # already lane-dense
    elif L <= 128 and (L & (L - 1)) == 0 and B % (128 // L) == 0:
        spr, W = 128 // L, 128                          # pack spr samples / row
    else:
        # Lane-sparse fallback: stream (tb, L) blocks directly. Correct for any
        # L and avoids an extra full-HBM pad/repack pass.
        spr, W = 1, L

    n_rows = B // spr
    x2d = inp.reshape(n_rows, W)            # copy-free (row-major merge)
    t2d = target.reshape(n_rows, W)

    # --- tile sizing: ~tile_bytes per streamed input tile, rows % 8 == 0 ----
    itemsize = jnp.dtype(inp.dtype).itemsize
    rows_budget = max(8, (tile_bytes // (W * itemsize)) // 8 * 8)
    tb = int(min(rows_budget, 8192, _round_up(n_rows, 8)))

    total_blocks = (n_rows + tb - 1) // tb
    n_chunks = 2 if total_blocks >= 2 else 1   # 2nd TensorCore on v7x
    bpc = (total_blocks + n_chunks - 1) // n_chunks
    last_blk = total_blocks - 1

    def in_map(c, i):
        # Clamp so the parallel split never requests a fully out-of-bounds
        # block; duplicated blocks contribute zero via the in-kernel row mask.
        return (jnp.minimum(c * bpc + i, last_blk), 0)

    kernel = functools.partial(_wbce_kernel, tb=tb, n_rows=n_rows)

    out = pl.pallas_call(
        kernel,
        out_shape=jax.ShapeDtypeStruct((n_chunks, 8, W), jnp.float32),
        grid=(n_chunks, bpc),
        in_specs=[
            pl.BlockSpec((tb, W), in_map),
            pl.BlockSpec((tb, W), in_map),
        ],
        out_specs=pl.BlockSpec((1, 8, W), lambda c, i: (c, 0, 0)),
        scratch_shapes=[pltpu.VMEM((8, W), jnp.float32)],
        compiler_params=pltpu.CompilerParams(
            dimension_semantics=("parallel", "arbitrary"),
            vmem_limit_bytes=48 * 1024 * 1024,
        ),
    )(x2d, t2d)

    # --- tiny finalize (hoisted out of the kernel): deferred weight multiply,
    #     chunk + sublane + lane reduces, negation and 1/(sum(w)*B) scale. -----
    col = out.sum(axis=(0, 1))                           # (W,) per-lane sums
    w_tiled = jnp.tile(w32, spr) if spr > 1 else w32     # (W,)
    inv_scale = 1.0 / (jnp.sum(w32) * B)
    return -jnp.dot(col, w_tiled) * inv_scale


def _reference(inp, target, label_weight):
    eps = 1e-15
    prob = jnp.clip(jax.nn.sigmoid(inp.astype(jnp.float32)), eps, 1.0 - eps)
    t = target.astype(jnp.float32)
    log_p = jnp.maximum(jnp.log(prob), -100.0)
    log_1mp = jnp.maximum(jnp.log(1.0 - prob), -100.0)
    loss = -(t * log_p + (1.0 - t) * log_1mp)
    w = label_weight.astype(jnp.float32)
    w_loss = (loss * w[None, :]).sum(axis=1) / w.sum()
    return w_loss.mean()


if __name__ == "__main__":
    key = jax.random.PRNGKey(0)
    k1, k2, k3 = jax.random.split(key, 3)

    # Primary case (matches the module's expected [batch, n_labels] layout).
    B, L = 8, 16
    inp = jax.random.normal(k1, (B, L), dtype=jnp.float32) * 3.0
    target = (jax.random.uniform(k2, (B, L)) > 0.5).astype(jnp.float32)
    label_weight = jax.random.uniform(k3, (L,), dtype=jnp.float32,
                                      minval=0.1, maxval=2.0)

    out = jax.block_until_ready(weighted_bce(inp, target, label_weight))
    ref = _reference(inp, target, label_weight)
    assert jnp.allclose(out, ref, rtol=1e-5, atol=1e-6), (out, ref)

    # Multi-block / 2-chunk grid + row-tail masking (tiny tile budget), bf16.
    k4, k5, k6 = jax.random.split(k3, 3)
    B2, L2 = 200, 16
    inp2 = jax.random.normal(k4, (B2, L2), dtype=jnp.bfloat16) * 3.0
    tgt2 = (jax.random.uniform(k5, (B2, L2)) > 0.5).astype(jnp.bfloat16)
    w2 = jax.random.uniform(k6, (L2,), dtype=jnp.float32, minval=0.1, maxval=2.0)
    out2 = jax.block_until_ready(weighted_bce(inp2, tgt2, w2, tile_bytes=512))
    ref2 = _reference(inp2, tgt2, w2)
    assert jnp.allclose(out2, ref2, rtol=1e-4, atol=1e-5), (out2, ref2)

    # Lane-sparse fallback path (L neither a power of two <=128 nor mult of 128).
    B3, L3 = 10, 24
    inp3 = jax.random.normal(k1, (B3, L3), dtype=jnp.float32)
    tgt3 = (jax.random.uniform(k2, (B3, L3)) > 0.5).astype(jnp.float32)
    w3 = jax.random.uniform(k3, (L3,), dtype=jnp.float32, minval=0.1, maxval=2.0)
    out3 = jax.block_until_ready(weighted_bce(inp3, tgt3, w3))
    ref3 = _reference(inp3, tgt3, w3)
    assert jnp.allclose(out3, ref3, rtol=1e-5, atol=1e-6), (out3, ref3)

    print("KERNEL_OK")
</pallas_src>

<mosaic_0001>
module attributes {stable_mosaic.version = 11 : i64} {
  func.func @_wbce_kernel(%arg0: i32, %arg1: i32, %arg2: memref<8x128xf32, #tpu.memory_space<vmem>>, %arg3: memref<8x128xf32, #tpu.memory_space<vmem>>, %arg4: memref<1x8x128xf32, #tpu.memory_space<vmem>>, %arg5: memref<8x128xf32, #tpu.memory_space<vmem>>) attributes {dimension_semantics = [#tpu.dimension_semantics<parallel>, #tpu.dimension_semantics<arbitrary>], iteration_bounds = array<i64: 1, 1>, scalar_prefetch = 0 : i64, scratch_operands = 1 : i64, tpu.core_type = #tpu.core_type<tc>, window_params = [{transform_indices = @transform_0, window_bounds = array<i64: 8, 128>}, {transform_indices = @transform_1, window_bounds = array<i64: 8, 128>}, {transform_indices = @transform_2, window_bounds = array<i64: 1, 8, 128>}]} {
    %c0_i32 = arith.constant 0 : i32
    %0 = arith.cmpi eq, %arg1, %c0_i32 : i32
    %1 = arith.extui %0 : i1 to i32
    %c0_i32_0 = arith.constant 0 : i32
    %2 = arith.cmpi ne, %1, %c0_i32_0 : i32
    scf.if %2 {
      %cst_17 = arith.constant 0.000000e+00 : f32
      %41 = vector.broadcast %cst_17 : f32 to vector<8x128xf32>
      %c0_18 = arith.constant 0 : index
      %c0_19 = arith.constant 0 : index
      %42 = vector.load %arg5[%c0_18, %c0_19] : memref<8x128xf32, #tpu.memory_space<vmem>>, vector<8x128xf32>
      tpu.vector_store %arg5[%c0_18, %c0_19], %41 {strides = array<i32>} : memref<8x128xf32, #tpu.memory_space<vmem>>, vector<8x128xf32>,
    } else {
    }
    %c0 = arith.constant 0 : index
    %c0_1 = arith.constant 0 : index
    %3 = vector.load %arg2[%c0, %c0_1] : memref<8x128xf32, #tpu.memory_space<vmem>>, vector<8x128xf32>
    %c0_2 = arith.constant 0 : index
    %c0_3 = arith.constant 0 : index
    %4 = vector.load %arg3[%c0_2, %c0_3] : memref<8x128xf32, #tpu.memory_space<vmem>>, vector<8x128xf32>
    %5 = arith.negf %3 : vector<8x128xf32>
    %6 = math.exp %5 : vector<8x128xf32>
    %cst = arith.constant 1.000000e+00 : f32
    %7 = vector.broadcast %cst : f32 to vector<8x128xf32>
    %8 = arith.addf %7, %6 : vector<8x128xf32>
    %9 = arith.divf %7, %8 : vector<8x128xf32>
    %cst_4 = arith.constant 1.000000e-15 : f32
    %10 = vector.broadcast %cst_4 : f32 to vector<8x128xf32>
    %11 = arith.maximumf %9, %10 : vector<8x128xf32>
    %12 = math.log %11 : vector<8x128xf32>
    %cst_5 = arith.constant -1.000000e+02 : f32
    %13 = vector.broadcast %cst_5 : f32 to vector<8x128xf32>
    %14 = arith.maximumf %12, %13 : vector<8x128xf32>
    %cst_6 = arith.constant 1.000000e+00 : f32
    %15 = vector.broadcast %cst_6 : f32 to vector<8x128xf32>
    %16 = arith.subf %15, %11 : vector<8x128xf32>
    %17 = math.log %16 : vector<8x128xf32>
    %cst_7 = arith.constant -1.000000e+02 : f32
    %18 = vector.broadcast %cst_7 : f32 to vector<8x128xf32>
    %19 = arith.maximumf %17, %18 : vector<8x128xf32>
    %20 = arith.subf %14, %19 : vector<8x128xf32>
    %21 = arith.mulf %4, %20 : vector<8x128xf32>
    %22 = arith.addf %21, %19 : vector<8x128xf32>
    %c1_i32 = arith.constant 1 : i32
    %23 = arith.muli %arg0, %c1_i32 : i32
    %24 = arith.addi %23, %arg1 : i32
    %c8_i32 = arith.constant 8 : i32
    %25 = arith.muli %24, %c8_i32 : i32
    %26 = tpu.iota {dimensions = array<i32: 0>} : vector<8x128xi32>
    %27 = vector.broadcast %25 : i32 to vector<8x128xi32>
    %28 = arith.addi %27, %26 : vector<8x128xi32>
    %c1_i32_8 = arith.constant 1 : i32
    %29 = vector.broadcast %c1_i32_8 : i32 to vector<8x128xi32>
    %30 = arith.cmpi slt, %28, %29 : vector<8x128xi32>
    %cst_9 = arith.constant 0.000000e+00 : f32
    %31 = vector.broadcast %cst_9 : f32 to vector<8x128xf32>
    %32 = arith.select %30, %22, %31 : vector<8x128xi1>, vector<8x128xf32>
    %c0_10 = arith.constant 0 : index
    %c0_11 = arith.constant 0 : index
    %33 = vector.load %arg5[%c0_10, %c0_11] : memref<8x128xf32, #tpu.memory_space<vmem>>, vector<8x128xf32>
    %34 = vector.shape_cast %32 : vector<8x128xf32> to vector<1x8x128xf32>
    %cst_12 = arith.constant dense<0.000000e+00> : vector<8x128xf32>
    %35 = vector.multi_reduction <add>, %34, %cst_12 [0] : vector<1x8x128xf32> to vector<8x128xf32>
    %36 = arith.addf %33, %35 : vector<8x128xf32>
    %c0_13 = arith.constant 0 : index
    %c0_14 = arith.constant 0 : index
    %37 = vector.load %arg5[%c0_13, %c0_14] : memref<8x128xf32, #tpu.memory_space<vmem>>, vector<8x128xf32>
    tpu.vector_store %arg5[%c0_13, %c0_14], %36 {strides = array<i32>} : memref<8x128xf32, #tpu.memory_space<vmem>>, vector<8x128xf32>,
    %c0_i32_15 = arith.constant 0 : i32
    %38 = arith.cmpi eq, %arg1, %c0_i32_15 : i32
    %39 = arith.extui %38 : i1 to i32
    %c0_i32_16 = arith.constant 0 : i32
    %40 = arith.cmpi ne, %39, %c0_i32_16 : i32
    scf.if %40 {
      %c0_17 = arith.constant 0 : index
      %c0_18 = arith.constant 0 : index
      %41 = vector.load %arg5[%c0_17, %c0_18] : memref<8x128xf32, #tpu.memory_space<vmem>>, vector<8x128xf32>
      %c0_19 = arith.constant 0 : index
      %c0_20 = arith.constant 0 : index
      %c0_21 = arith.constant 0 : index
      %42 = vector.load %arg4[%c0_19, %c0_20, %c0_21] : memref<1x8x128xf32, #tpu.memory_space<vmem>>, vector<1x8x128xf32>
      %43 = vector.shape_cast %42 : vector<1x8x128xf32> to vector<8x128xf32>
      %44 = vector.shape_cast %41 : vector<8x128xf32> to vector<1x8x128xf32>
      tpu.vector_store %arg4[%c0_19, %c0_20, %c0_21], %44 {strides = array<i32>} : memref<1x8x128xf32, #tpu.memory_space<vmem>>, vector<1x8x128xf32>,
    } else {
    }
    return
  }
  func.func @transform_0(%arg0: i32, %arg1: i32) -> (i32, i32) {
    %c1_i32 = arith.constant 1 : i32
    %0 = arith.muli %arg0, %c1_i32 : i32
    %1 = arith.addi %0, %arg1 : i32
    %c0_i32 = arith.constant 0 : i32
    %2 = arith.minsi %1, %c0_i32 : i32
    %c0_i32_0 = arith.constant 0 : i32
    %c0_i32_1 = arith.constant 0 : i32
    return %2, %c0_i32_0 : i32, i32
  }
  func.func @transform_1(%arg0: i32, %arg1: i32) -> (i32, i32) {
    %c1_i32 = arith.constant 1 : i32
    %0 = arith.muli %arg0, %c1_i32 : i32
    %1 = arith.addi %0, %arg1 : i32
    %c0_i32 = arith.constant 0 : i32
    %2 = arith.minsi %1, %c0_i32 : i32
    %c0_i32_0 = arith.constant 0 : i32
    %c0_i32_1 = arith.constant 0 : i32
    return %2, %c0_i32_0 : i32, i32
  }
  func.func @transform_2(%arg0: i32, %arg1: i32) -> (i32, i32, i32) {
    %c0_i32 = arith.constant 0 : i32
    %c0_i32_0 = arith.constant 0 : i32
    %c0_i32_1 = arith.constant 0 : i32
    return %arg0, %c0_i32, %c0_i32_0 : i32, i32, i32
  }
}

</mosaic_0001>

<llo_original>
// kernel: tpu_custom_call.1
$region0: #{tpu_custom_call.1}
  #allocation0 [shape = 'u32[]', space=smem, size = 0x4, offset = 0x4, fixed_abs, tag = 'smem constant byte address 0x4 - core index']
  #allocation1 [shape = 'u32[72,128]{1,0:T(1,128)}', space=vmem, size = 0x9000, scoped, tag = 'internal scratch']
  #allocation2 [shape = 'f32[8,128]{1,0:T(8,128)}', space=vmem, size = 0x1000, scoped, tag = 'scratch operand']
  %s0 = inlined_call_operand.hbm [shape: f32[1,128], index: 0, kind: input, shape index: {}]
  %s1 = inlined_call_operand.hbm [shape: f32[1,128], index: 1, kind: input, shape index: {}]
  %s2 = inlined_call_operand.hbm [shape: f32[1,8,128], index: 2, kind: output, shape index: {}]
  %s3 = sld [smem:[#allocation0]]
  $region34: #{tpu_custom_call.1} parent=0
    _
  %s5 = ssub.s32 1, %s3
  %s6 = scalar_select 0, %s5, %s3
  $region1: #{tpu_custom_call.1} parent=0
    #allocation3 [shape = 'u8[4096]{0}', space=vmem, size = 0x1000, scoped, tag = 'input window, operand 0, single buffered']
    #allocation4 [shape = 's32[1]{0}', space=sflag, size = 0x4, scoped, tag = 'scoped memory for tpu_custom_call.1']
    #allocation5 [shape = 's32[1]{0}', space=sflag, size = 0x4, scoped, tag = 'scoped memory for tpu_custom_call.1']
    #allocation6 [shape = 'u8[4096]{0}', space=vmem, size = 0x1000, scoped, tag = 'input window, operand 1, single buffered']
    #allocation7 [shape = 's32[1]{0}', space=sflag, size = 0x4, scoped, tag = 'scoped memory for tpu_custom_call.1']
    #allocation8 [shape = 'u8[4096]{0}', space=vmem, size = 0x1000, scoped, tag = 'output window, operand 0, single buffered']
    %7 = vsyncpa [#allocation4], 0
    %8 = vsyncpa [#allocation7], 0
    %9 = vsyncpa [#allocation5], 0
    // Predicated region
    $region2: #{tpu_custom_call.1} parent=1 // pred_check
      _
    $region3: #{tpu_custom_call.1} parent=1 // pred_check_branch
      %11 = sbr.rel (0) target = $region5
    $region4: #{tpu_custom_call.1} parent=1 // pred_region
      %s12 = sadd.s32 0, 0
      %p13 = scmp.lt.s32.totalorder %s12, 0
      %s14 = scalar_select %p13, %s12, 0
      %s15 = smul.u32 8, %s14
      %s16 = ssub.s32 1, %s15
      %s17 = ssub.s32 8, %s16
      %s18 = sshll.u32 %s17, 4
      %19 = vsyncadd [#allocation4], %s18
      %p20 = scmp.ne.s32.totalorder 0, %s16
      %s21 = scalar_lea.hbm %s0, %s15
      %s22 = sshll.u32 %s21, 4
      %s23 = int_to_ptr.hbm [resolvable:$true] %s22
      %s24 = sshll.u32 [#allocation3], 4
      %s25 = int_to_ptr.vmem [resolvable:$true] %s24
      %s26 = sshll.u32 %s16, 4
      %30 = dma.hbm_to_vmem [thread:$0]  (%p20), %s23, %s26, %s25, [#allocation4], 16, 16, 1
    $region5: #{tpu_custom_call.1} parent=1 // pred_fallthru
      _
    // Predicated region
    $region6: #{tpu_custom_call.1} parent=1 // pred_check
      _
    $region7: #{tpu_custom_call.1} parent=1 // pred_check_branch
      %32 = sbr.rel (0) target = $region9
    $region8: #{tpu_custom_call.1} parent=1 // pred_region
      %s33 = sadd.s32 0, 0
      %p34 = scmp.lt.s32.totalorder %s33, 0
      %s35 = scalar_select %p34, %s33, 0
      %s36 = smul.u32 8, %s35
      %s37 = ssub.s32 1, %s36
      %s38 = ssub.s32 8, %s37
      %s39 = sshll.u32 %s38, 4
      %40 = vsyncadd [#allocation7], %s39
      %p41 = scmp.ne.s32.totalorder 0, %s37
      %s42 = scalar_lea.hbm %s1, %s36
      %s43 = sshll.u32 %s42, 4
      %s44 = int_to_ptr.hbm [resolvable:$true] %s43
      %s45 = sshll.u32 [#allocation6], 4
      %s46 = int_to_ptr.vmem [resolvable:$true] %s45
      %s47 = sshll.u32 %s37, 4
      %51 = dma.hbm_to_vmem [thread:$0]  (%p41), %s44, %s47, %s46, [#allocation7], 16, 16, 1
    $region9: #{tpu_custom_call.1} parent=1 // pred_fallthru
      _
    // Predicated region
    $region10: #{tpu_custom_call.1} parent=1 // pred_check
      _
    $region11: #{tpu_custom_call.1} parent=1 // pred_check_branch
      %53 = sbr.rel (0) target = $region13
    $region12: #{tpu_custom_call.1} parent=1 // pred_region
      %55 = dma.done [#allocation4], 128
    $region13: #{tpu_custom_call.1} parent=1 // pred_fallthru
      _
    // Predicated region
    $region14: #{tpu_custom_call.1} parent=1 // pred_check
      _
    $region15: #{tpu_custom_call.1} parent=1 // pred_check_branch
      %57 = sbr.rel (0) target = $region17
    $region16: #{tpu_custom_call.1} parent=1 // pred_region
      %59 = dma.done [#allocation7], 128
    $region17: #{tpu_custom_call.1} parent=1 // pred_fallthru
      _
    %s60 = sadd.s32 0, 0
    %p61 = scmp.lt.s32.totalorder %s60, 0
    %s62 = scalar_select %p61, %s60, 0
    %s63 = smul.u32 8, %s62
    %s64 = ssub.s32 1, %s63
    %s65 = sadd.s32 0, 0
    %p66 = scmp.lt.s32.totalorder %s65, 0
    %s67 = scalar_select %p66, %s65, 0
    %s68 = smul.u32 8, %s67
    %s69 = ssub.s32 1, %s68
    %p70 = scmp.eq.s32.totalorder 0, 0
    // Predicated region
    $region18: #{tpu_custom_call.1} parent=1 // pred_check
      %p71 = pneg %p70
    $region19: #{tpu_custom_call.1} parent=1 // pred_check_branch
      %73 = sbr.rel (%p71) target = $region21
    $region20: #{tpu_custom_call.1} parent=1 // pred_region
      %74 = vst [vmem:[#allocation2] sm:$0xff] 0.0
    $region21: #{tpu_custom_call.1} parent=1 // pred_fallthru
      _
    %v75 = vld [vmem:[#allocation3] sm:$0xff]
    %v76 = vld [vmem:[#allocation6] sm:$0xff]
    %v77 = vxor.u32 %v75, 2147483648
    %v78 = vmul.f32 %v77, 1.442695
    %v79 = vpow.pop %v78
    %v80 = vadd.f32 %v79, 1.0
    %v81 = vrcp.pop %v80
    %v82 = vmul.f32 %v80, %v81
    %v83 = vsub.f32 1.0, %v82
    %v84 = vmul.f32 %v81, %v83
    %v85 = vadd.f32 %v81, %v84
    %vm86 = vweird.f32 %v80
    %vm87 = vweird.f32 %v81
    %vm88 = vmor %vm86, %vm87
    %v89 = vsel %vm88, %v81, %v85
    %v90 = vand.u32 2147483647, %v80
    %vm91 = vcmp.eq.f32.partialorder %v90, 8.507059e+37
    %v92 = vand.u32 %v80, 2147483648
    %v93 = vor.u32 1.1754944e-38, %v92
    %v94 = vsel %vm91, %v93, %v89
    %v95 = vmul.f32 1.0, %v94
    %v96 = vmax.f32 %v95, 1e-15
    %v97 = vlog2.pop %v96
    %v98 = vmul.f32 %v97, 0.6931472
    %v99 = vmax.f32 %v98, -100.0
    %v100 = vsub.f32 1.0, %v96
    %v101 = vlog2.pop %v100
    %v102 = vmul.f32 %v101, 0.6931472
    %v103 = vmax.f32 %v102, -100.0
    %v104 = vsub.f32 %v99, %v103
    %v105 = vmul.f32 %v76, %v104
    %v106 = vadd.f32 %v105, %v103
    %s107 = sadd.s32 0, 0
    %s108 = smul.u32 %s107, 8
    %v109 = vlaneseq
    %v110 = vshrl.u32 %v109, 7
    %v111 = vstv %s108
    %v112 = vadd.s32 %v111, %v110
    %vm113 = vcmp.lt.s32.totalorder %v112, 1
    %v114 = vsel %vm113, %v106, 0.0
    %v115 = vld [vmem:[#allocation2] sm:$0xff]
    %v116 = vadd.f32 %v114, 0.0
    %v117 = vadd.f32 %v115, %v116
    %118 = vst [vmem:[#allocation2] sm:$0xff] %v117
    // Predicated region
    $region22: #{tpu_custom_call.1} parent=1 // pred_check
      %p119 = pneg %p70
    $region23: #{tpu_custom_call.1} parent=1 // pred_check_branch
      %121 = sbr.rel (%p119) target = $region25
    $region24: #{tpu_custom_call.1} parent=1 // pred_region
      %v122 = vld [vmem:[#allocation2] sm:$0xff]
      %123 = vst [vmem:[#allocation8] sm:$0xff] %v122
    $region25: #{tpu_custom_call.1} parent=1 // pred_fallthru
      _
    // Predicated region
    $region26: #{tpu_custom_call.1} parent=1 // pred_check
      _
    $region27: #{tpu_custom_call.1} parent=1 // pred_check_branch
      %125 = sbr.rel (0) target = $region29
    $region28: #{tpu_custom_call.1} parent=1 // pred_region
      %127 = vsyncadd [#allocation5], 0
      %s129 = sshll.u32 [#allocation8], 4
      %s130 = int_to_ptr.vmem [resolvable:$true] %s129
      %s131 = sshll.u32 %s2, 4
      %s132 = int_to_ptr.hbm [resolvable:$true] %s131
      %134 = dma.vmem_to_hbm [thread:$0]  %s130, 128, %s132, [#allocation5]
    $region29: #{tpu_custom_call.1} parent=1 // pred_fallthru
      _
    // Predicated region
    $region30: #{tpu_custom_call.1} parent=1 // pred_check
      _
    $region31: #{tpu_custom_call.1} parent=1 // pred_check_branch
      %136 = sbr.rel (0) target = $region33
    $region32: #{tpu_custom_call.1} parent=1 // pred_region
      %138 = dma.done [#allocation5], 128
    $region33: #{tpu_custom_call.1} parent=1 // pred_fallthru
      _
    %139 = vsyncpa [#allocation4], 1
    %140 = vsyncpa [#allocation7], 1
    %141 = vsyncpa [#allocation5], 1

</llo_original>
